<compile_context>
chip_gen: v6e
topology: v6e:2x2x1
jax: 0.10.0
libtpu: 0.0.40
codegen_flags: <defaults>
</compile_context>

<pallas_src>
import jax
import jax.numpy as jnp
from jax.experimental import pallas as pl
from jax.experimental.pallas import tpu as pltpu

_LANES = 512          # lane-dense last dim (multiple of 128)
_MAX_TILE_ROWS = 512  # tile height; (512, 512) f32 = 1 MiB per input block


def _physics_loss_kernel(cls_ref, tgt_ref, rad_ref, out_ref, acc_ref):
    i = pl.program_id(0)

    @pl.when(i == 0)
    def _init():
        acc_ref[0] = 0.0
        acc_ref[1] = 0.0

    # --- BCE partial sum over this tile (log clamped at -100, like torch) ---
    p = cls_ref[...].astype(jnp.float32)
    t = tgt_ref[...].astype(jnp.float32)
    log_p = jnp.maximum(jnp.log(p), -100.0)
    log_1mp = jnp.maximum(jnp.log(1.0 - p), -100.0)
    bce = -(t * log_p + (1.0 - t) * log_1mp)
    acc_ref[0] = acc_ref[0] + jnp.sum(bce)

    # --- radius penalty partial sum: relu(r - 5) + relu(0.5 - r) ---
    r = rad_ref[...].astype(jnp.float32)
    pen = jnp.maximum(r - 5.0, 0.0) + jnp.maximum(0.5 - r, 0.0)
    acc_ref[1] = acc_ref[1] + jnp.sum(pen)

    @pl.when(i == pl.num_programs(0) - 1)
    def _finalize():
        out_ref[0, 0] = acc_ref[0]
        out_ref[0, 1] = acc_ref[1]


def _to_slab(x, total_len, rows, pad_value):
    """Flatten x and pad to total_len with pad_value, reshape to (rows, _LANES)."""
    flat = x.reshape(-1)
    n = flat.shape[0]
    if total_len > n:
        pad = jnp.full((total_len - n,), pad_value, dtype=flat.dtype)
        flat = jnp.concatenate([flat, pad])
    return flat.reshape(rows, _LANES)


def physics_aware_loss(cls_logits, targets, radius_pred, alpha=0.5):
    """outputs = (cls_logits, radius_pred); returns scalar total loss (f32)."""
    assert cls_logits.shape == targets.shape
    n_cls = int(cls_logits.size)
    n_rad = int(radius_pred.size)

    max_n = max(n_cls, n_rad)
    rows = -(-max_n // _LANES)                       # ceil
    tile_rows = min(_MAX_TILE_ROWS, rows)
    num_tiles = -(-rows // tile_rows)                # ceil
    rows_padded = num_tiles * tile_rows
    total_len = rows_padded * _LANES

    # Padding values chosen so padded elements contribute exactly 0:
    #   BCE(p=1, t=1) = 0 ; penalty(r=1) = 0.
    cls2 = _to_slab(cls_logits, total_len, rows_padded, 1.0)
    tgt2 = _to_slab(targets, total_len, rows_padded, 1.0)
    rad2 = _to_slab(radius_pred, total_len, rows_padded, 1.0)

    block = pl.BlockSpec((tile_rows, _LANES), lambda i: (i, 0))

    sums = pl.pallas_call(
        _physics_loss_kernel,
        out_shape=jax.ShapeDtypeStruct((1, 2), jnp.float32),
        grid_spec=pltpu.PrefetchScalarGridSpec(
            num_scalar_prefetch=0,
            grid=(num_tiles,),
            in_specs=[block, block, block],
            out_specs=pl.BlockSpec((1, 2), lambda i: (0, 0),
                                   memory_space=pltpu.MemorySpace.SMEM),
            scratch_shapes=[pltpu.SMEM((2,), jnp.float32)],
        ),
        compiler_params=pltpu.CompilerParams(
            dimension_semantics=("arbitrary",),
            vmem_limit_bytes=32 * 1024 * 1024,
        ),
    )(cls2, tgt2, rad2)

    cls_loss = sums[0, 0] / n_cls
    radius_penalty = sums[0, 1] / n_rad
    # TODO(synk): on v7x, split the row grid across the 2 TensorCores with a
    # leading "parallel" axis and per-core partial sums combined here.
    return cls_loss + alpha * radius_penalty


def _reference_loss(cls_logits, targets, radius_pred, alpha=0.5):
    p = cls_logits.astype(jnp.float32)
    t = targets.astype(jnp.float32)
    bce = -(t * jnp.maximum(jnp.log(p), -100.0)
            + (1.0 - t) * jnp.maximum(jnp.log(1.0 - p), -100.0))
    cls_loss = jnp.mean(bce)
    r = radius_pred.astype(jnp.float32)
    pen = jnp.mean(jnp.maximum(r - 5.0, 0.0) + jnp.maximum(0.5 - r, 0.0))
    return cls_loss + alpha * pen


if __name__ == "__main__":
    key = jax.random.PRNGKey(0)
    k1, k2, k3 = jax.random.split(key, 3)

    # Shapes consistent with a detection-style head: NCHW = (2, 4, 16, 16)
    shape = (2, 4, 16, 16)
    cls_logits = jax.nn.sigmoid(jax.random.normal(k1, shape, jnp.float32))
    targets = (jax.random.uniform(k2, shape) > 0.5).astype(jnp.float32)
    radius_pred = jax.random.uniform(k3, shape, jnp.float32, minval=0.0, maxval=8.0)

    loss = physics_aware_loss(cls_logits, targets, radius_pred, alpha=0.5)
    loss = jax.block_until_ready(loss)

    ref = _reference_loss(cls_logits, targets, radius_pred, alpha=0.5)
    assert jnp.allclose(loss, ref, rtol=1e-5, atol=1e-5), (loss, ref)

    print("KERNEL_OK")
</pallas_src>

<mosaic_0001>
module attributes {stable_mosaic.version = 11 : i64} {
  func.func @_physics_loss_kernel(%arg0: i32, %arg1: memref<4x512xf32, #tpu.memory_space<vmem>>, %arg2: memref<4x512xf32, #tpu.memory_space<vmem>>, %arg3: memref<4x512xf32, #tpu.memory_space<vmem>>, %arg4: memref<1x2xf32, #tpu.memory_space<smem>>, %arg5: memref<2xf32, #tpu.memory_space<smem>>) attributes {dimension_semantics = [#tpu.dimension_semantics<arbitrary>], iteration_bounds = array<i64: 1>, scalar_prefetch = 0 : i64, scratch_operands = 1 : i64, tpu.core_type = #tpu.core_type<tc>, window_params = [{transform_indices = @transform_0, window_bounds = array<i64: 4, 512>}, {transform_indices = @transform_1, window_bounds = array<i64: 4, 512>}, {transform_indices = @transform_2, window_bounds = array<i64: 4, 512>}, {transform_indices = @transform_3, window_bounds = array<i64: 1, 2>}]} {
    %c0_i32 = arith.constant 0 : i32
    %0 = arith.cmpi eq, %arg0, %c0_i32 : i32
    %1 = arith.extui %0 : i1 to i32
    %c0_i32_0 = arith.constant 0 : i32
    %2 = arith.cmpi ne, %1, %c0_i32_0 : i32
    scf.if %2 {
      %cst_21 = arith.constant 0.000000e+00 : f32
      %c0_22 = arith.constant 0 : index
      %47 = memref.load %arg5[%c0_22] : memref<2xf32, #tpu.memory_space<smem>>
      memref.store %cst_21, %arg5[%c0_22] : memref<2xf32, #tpu.memory_space<smem>>
      %cst_23 = arith.constant 0.000000e+00 : f32
      %c1_24 = arith.constant 1 : index
      %48 = memref.load %arg5[%c1_24] : memref<2xf32, #tpu.memory_space<smem>>
      memref.store %cst_23, %arg5[%c1_24] : memref<2xf32, #tpu.memory_space<smem>>
    } else {
    }
    %c0 = arith.constant 0 : index
    %c0_1 = arith.constant 0 : index
    %3 = vector.load %arg1[%c0, %c0_1] : memref<4x512xf32, #tpu.memory_space<vmem>>, vector<4x512xf32>
    %c0_2 = arith.constant 0 : index
    %c0_3 = arith.constant 0 : index
    %4 = vector.load %arg2[%c0_2, %c0_3] : memref<4x512xf32, #tpu.memory_space<vmem>>, vector<4x512xf32>
    %5 = math.log %3 : vector<4x512xf32>
    %cst = arith.constant -1.000000e+02 : f32
    %6 = vector.broadcast %cst : f32 to vector<4x512xf32>
    %7 = arith.maximumf %5, %6 : vector<4x512xf32>
    %cst_4 = arith.constant 1.000000e+00 : f32
    %8 = vector.broadcast %cst_4 : f32 to vector<4x512xf32>
    %9 = arith.subf %8, %3 : vector<4x512xf32>
    %10 = math.log %9 : vector<4x512xf32>
    %cst_5 = arith.constant -1.000000e+02 : f32
    %11 = vector.broadcast %cst_5 : f32 to vector<4x512xf32>
    %12 = arith.maximumf %10, %11 : vector<4x512xf32>
    %13 = arith.mulf %4, %7 : vector<4x512xf32>
    %cst_6 = arith.constant 1.000000e+00 : f32
    %14 = vector.broadcast %cst_6 : f32 to vector<4x512xf32>
    %15 = arith.subf %14, %4 : vector<4x512xf32>
    %16 = arith.mulf %15, %12 : vector<4x512xf32>
    %17 = arith.addf %13, %16 : vector<4x512xf32>
    %cst_7 = arith.constant 0.000000e+00 : f32
    %18 = vector.broadcast %cst_7 : f32 to vector<4x512xf32>
    %19 = arith.subf %18, %17 : vector<4x512xf32>
    %c0_8 = arith.constant 0 : index
    %20 = memref.load %arg5[%c0_8] : memref<2xf32, #tpu.memory_space<smem>>
    %21 = vector.shape_cast %19 : vector<4x512xf32> to vector<1x4x512xf32>
    %cst_9 = arith.constant dense<0.000000e+00> : vector<1xf32>
    %22 = vector.multi_reduction <add>, %21, %cst_9 [1, 2] : vector<1x4x512xf32> to vector<1xf32>
    %23 = vector.shape_cast %22 : vector<1xf32> to vector<1x1x1xf32>
    %24 = vector.extract %23[0, 0, 0] : f32 from vector<1x1x1xf32>
    %25 = arith.addf %20, %24 : f32
    %c0_10 = arith.constant 0 : index
    %26 = memref.load %arg5[%c0_10] : memref<2xf32, #tpu.memory_space<smem>>
    memref.store %25, %arg5[%c0_10] : memref<2xf32, #tpu.memory_space<smem>>
    %c0_11 = arith.constant 0 : index
    %c0_12 = arith.constant 0 : index
    %27 = vector.load %arg3[%c0_11, %c0_12] : memref<4x512xf32, #tpu.memory_space<vmem>>, vector<4x512xf32>
    %cst_13 = arith.constant 5.000000e+00 : f32
    %28 = vector.broadcast %cst_13 : f32 to vector<4x512xf32>
    %29 = arith.subf %27, %28 : vector<4x512xf32>
    %cst_14 = arith.constant 0.000000e+00 : f32
    %30 = vector.broadcast %cst_14 : f32 to vector<4x512xf32>
    %31 = arith.maximumf %29, %30 : vector<4x512xf32>
    %cst_15 = arith.constant 5.000000e-01 : f32
    %32 = vector.broadcast %cst_15 : f32 to vector<4x512xf32>
    %33 = arith.subf %32, %27 : vector<4x512xf32>
    %cst_16 = arith.constant 0.000000e+00 : f32
    %34 = vector.broadcast %cst_16 : f32 to vector<4x512xf32>
    %35 = arith.maximumf %33, %34 : vector<4x512xf32>
    %36 = arith.addf %31, %35 : vector<4x512xf32>
    %c1 = arith.constant 1 : index
    %37 = memref.load %arg5[%c1] : memref<2xf32, #tpu.memory_space<smem>>
    %38 = vector.shape_cast %36 : vector<4x512xf32> to vector<1x4x512xf32>
    %cst_17 = arith.constant dense<0.000000e+00> : vector<1xf32>
    %39 = vector.multi_reduction <add>, %38, %cst_17 [1, 2] : vector<1x4x512xf32> to vector<1xf32>
    %40 = vector.shape_cast %39 : vector<1xf32> to vector<1x1x1xf32>
    %41 = vector.extract %40[0, 0, 0] : f32 from vector<1x1x1xf32>
    %42 = arith.addf %37, %41 : f32
    %c1_18 = arith.constant 1 : index
    %43 = memref.load %arg5[%c1_18] : memref<2xf32, #tpu.memory_space<smem>>
    memref.store %42, %arg5[%c1_18] : memref<2xf32, #tpu.memory_space<smem>>
    %c0_i32_19 = arith.constant 0 : i32
    %44 = arith.cmpi eq, %arg0, %c0_i32_19 : i32
    %45 = arith.extui %44 : i1 to i32
    %c0_i32_20 = arith.constant 0 : i32
    %46 = arith.cmpi ne, %45, %c0_i32_20 : i32
    scf.if %46 {
      %c0_21 = arith.constant 0 : index
      %47 = memref.load %arg5[%c0_21] : memref<2xf32, #tpu.memory_space<smem>>
      %c0_22 = arith.constant 0 : index
      %c0_23 = arith.constant 0 : index
      %48 = memref.load %arg4[%c0_22, %c0_23] : memref<1x2xf32, #tpu.memory_space<smem>>
      memref.store %47, %arg4[%c0_22, %c0_23] : memref<1x2xf32, #tpu.memory_space<smem>>
      %c1_24 = arith.constant 1 : index
      %49 = memref.load %arg5[%c1_24] : memref<2xf32, #tpu.memory_space<smem>>
      %c0_25 = arith.constant 0 : index
      %c1_26 = arith.constant 1 : index
      %50 = memref.load %arg4[%c0_25, %c1_26] : memref<1x2xf32, #tpu.memory_space<smem>>
      memref.store %49, %arg4[%c0_25, %c1_26] : memref<1x2xf32, #tpu.memory_space<smem>>
    } else {
    }
    return
  }
  func.func @transform_0(%arg0: i32) -> (i32, i32) {
    %c0_i32 = arith.constant 0 : i32
    %c0_i32_0 = arith.constant 0 : i32
    return %arg0, %c0_i32 : i32, i32
  }
  func.func @transform_1(%arg0: i32) -> (i32, i32) {
    %c0_i32 = arith.constant 0 : i32
    %c0_i32_0 = arith.constant 0 : i32
    return %arg0, %c0_i32 : i32, i32
  }
  func.func @transform_2(%arg0: i32) -> (i32, i32) {
    %c0_i32 = arith.constant 0 : i32
    %c0_i32_0 = arith.constant 0 : i32
    return %arg0, %c0_i32 : i32, i32
  }
  func.func @transform_3(%arg0: i32) -> (i32, i32) {
    %c0_i32 = arith.constant 0 : i32
    %c0_i32_0 = arith.constant 0 : i32
    %c0_i32_1 = arith.constant 0 : i32
    return %c0_i32, %c0_i32_0 : i32, i32
  }
}

</mosaic_0001>

<llo_original>
// kernel: tpu_custom_call.1
$region0: #{tpu_custom_call.1}
  #allocation0 [shape = 'u32[]', space=smem, size = 0x4, offset = 0x4, fixed_abs, tag = 'smem constant byte address 0x4 - core index']
  #allocation1 [shape = 'u32[144,128]{1,0:T(1,128)}', space=vmem, size = 0x12000, scoped, tag = 'internal scratch']
  #allocation2 [shape = 'f32[2]{0:T(128)}', space=smem, size = 0x200, scoped, tag = 'scratch operand']
  %s0 = inlined_call_operand.hbm [shape: f32[4,512], index: 0, kind: input, shape index: {}]
  %s1 = inlined_call_operand.hbm [shape: f32[4,512], index: 1, kind: input, shape index: {}]
  %s2 = inlined_call_operand.hbm [shape: f32[4,512], index: 2, kind: input, shape index: {}]
  %s3 = inlined_call_operand.hbm [shape: f32[1,2], index: 3, kind: output, shape index: {}]
  %s4 = sld [smem:[#allocation0]]
  $region42: #{tpu_custom_call.1} parent=0
    _
  %s6 = ssub.s32 1, %s4
  %s7 = scalar_select 0, %s6, %s4
  $region1: #{tpu_custom_call.1} parent=0
    #allocation3 [shape = 'u8[8192]{0}', space=vmem, size = 0x2000, scoped, tag = 'input window, operand 0, single buffered']
    #allocation4 [shape = 's32[1]{0}', space=sflag, size = 0x4, scoped, tag = 'scoped memory for tpu_custom_call.1']
    #allocation5 [shape = 's32[1]{0}', space=sflag, size = 0x4, scoped, tag = 'scoped memory for tpu_custom_call.1']
    #allocation6 [shape = 'u8[8192]{0}', space=vmem, size = 0x2000, scoped, tag = 'input window, operand 1, single buffered']
    #allocation7 [shape = 's32[1]{0}', space=sflag, size = 0x4, scoped, tag = 'scoped memory for tpu_custom_call.1']
    #allocation8 [shape = 'u8[8192]{0}', space=vmem, size = 0x2000, scoped, tag = 'input window, operand 2, single buffered']
    #allocation9 [shape = 'u8[512]{0}', space=smem, size = 0x200, scoped, tag = 'output window, operand 0, single buffered']
    %8 = vsyncpa [#allocation4], 0
    %9 = vsyncpa [#allocation7], 0
    %10 = vsyncpa [#allocation5], 0
    // Predicated region
    $region2: #{tpu_custom_call.1} parent=1 // pred_check
      _
    $region3: #{tpu_custom_call.1} parent=1 // pred_check_branch
      %12 = sbr.rel (0) target = $region5
    $region4: #{tpu_custom_call.1} parent=1 // pred_region
      %s14 = ssub.s32 256, 256
      %15 = vsyncadd [#allocation4], %s14
      %s17 = sshll.u32 [#allocation3], 4
      %s18 = int_to_ptr.vmem [resolvable:$true] %s17
      %20 = dma.hbm_to_vmem [thread:$0]  %s0, 256, %s18, [#allocation4]
    $region5: #{tpu_custom_call.1} parent=1 // pred_fallthru
      _
    // Predicated region
    $region6: #{tpu_custom_call.1} parent=1 // pred_check
      _
    $region7: #{tpu_custom_call.1} parent=1 // pred_check_branch
      %22 = sbr.rel (0) target = $region9
    $region8: #{tpu_custom_call.1} parent=1 // pred_region
      %s24 = ssub.s32 256, 256
      %25 = vsyncadd [#allocation7], %s24
      %s27 = sshll.u32 [#allocation6], 4
      %s28 = int_to_ptr.vmem [resolvable:$true] %s27
      %30 = dma.hbm_to_vmem [thread:$0]  %s1, 256, %s28, [#allocation7]
    $region9: #{tpu_custom_call.1} parent=1 // pred_fallthru
      _
    // Predicated region
    $region10: #{tpu_custom_call.1} parent=1 // pred_check
      _
    $region11: #{tpu_custom_call.1} parent=1 // pred_check_branch
      %32 = sbr.rel (0) target = $region13
    $region12: #{tpu_custom_call.1} parent=1 // pred_region
      %s34 = ssub.s32 256, 256
      %35 = vsyncadd [#allocation7], %s34
      %s37 = sshll.u32 [#allocation8], 4
      %s38 = int_to_ptr.vmem [resolvable:$true] %s37
      %40 = dma.hbm_to_vmem [thread:$0]  %s2, 256, %s38, [#allocation7]
    $region13: #{tpu_custom_call.1} parent=1 // pred_fallthru
      _
    // Predicated region
    $region14: #{tpu_custom_call.1} parent=1 // pred_check
      _
    $region15: #{tpu_custom_call.1} parent=1 // pred_check_branch
      %42 = sbr.rel (0) target = $region17
    $region16: #{tpu_custom_call.1} parent=1 // pred_region
      %43 = dma.done [#allocation4], 256
    $region17: #{tpu_custom_call.1} parent=1 // pred_fallthru
      _
    // Predicated region
    $region18: #{tpu_custom_call.1} parent=1 // pred_check
      _
    $region19: #{tpu_custom_call.1} parent=1 // pred_check_branch
      %45 = sbr.rel (0) target = $region21
    $region20: #{tpu_custom_call.1} parent=1 // pred_region
      %46 = dma.done [#allocation7], 256
    $region21: #{tpu_custom_call.1} parent=1 // pred_fallthru
      _
    // Predicated region
    $region22: #{tpu_custom_call.1} parent=1 // pred_check
      _
    $region23: #{tpu_custom_call.1} parent=1 // pred_check_branch
      %48 = sbr.rel (0) target = $region25
    $region24: #{tpu_custom_call.1} parent=1 // pred_region
      %49 = dma.done [#allocation7], 256
    $region25: #{tpu_custom_call.1} parent=1 // pred_fallthru
      _
    %p50 = scmp.eq.s32.totalorder 0, 0
    // Predicated region
    $region26: #{tpu_custom_call.1} parent=1 // pred_check
      %p51 = pneg %p50
    $region27: #{tpu_custom_call.1} parent=1 // pred_check_branch
      %53 = sbr.rel (%p51) target = $region29
    $region28: #{tpu_custom_call.1} parent=1 // pred_region
      %s54 = scalar_lea.smem [#allocation2], 0
      %55 = sst [smem:[%s54]] 0.0
      %s56 = scalar_lea.smem [#allocation2], 1
      %57 = sst [smem:[%s56]] 0.0
    $region29: #{tpu_custom_call.1} parent=1 // pred_fallthru
      _
    %v58 = vld [vmem:[#allocation3] sm:$0xff]
    %v59 = vld [vmem:[#allocation3 + $0x8] sm:$0xff]
    %v60 = vld [vmem:[#allocation6] sm:$0xff]
    %v61 = vld [vmem:[#allocation6 + $0x8] sm:$0xff]
    %v62 = vlog2.pop %v58
    %v63 = vmul.f32 %v62, 0.6931472
    %v64 = vlog2.pop %v59
    %v65 = vmul.f32 %v64, 0.6931472
    %v66 = vmax.f32 %v63, -100.0
    %v67 = vmax.f32 %v65, -100.0
    %v68 = vsub.f32 1.0, %v58
    %v69 = vsub.f32 1.0, %v59
    %v70 = vlog2.pop %v68
    %v71 = vmul.f32 %v70, 0.6931472
    %v72 = vlog2.pop %v69
    %v73 = vmul.f32 %v72, 0.6931472
    %v74 = vmax.f32 %v71, -100.0
    %v75 = vmax.f32 %v73, -100.0
    %v76 = vmul.f32 %v60, %v66
    %v77 = vmul.f32 %v61, %v67
    %v78 = vsub.f32 1.0, %v60
    %v79 = vsub.f32 1.0, %v61
    %v80 = vmul.f32 %v78, %v74
    %v81 = vmul.f32 %v79, %v75
    %v82 = vadd.f32 %v76, %v80
    %v83 = vadd.f32 %v77, %v81
    %v84 = vsub.f32 0.0, %v82
    %v85 = vsub.f32 0.0, %v83
    %s86 = sld [smem:[#allocation2]]
    %v89 = vcombine.high %v84, %v84
    %v90 = vcombine.high %v85, %v85
    %vm93 = vcmask 1043456
    %v94 = vsel %vm93, %v84, 0.0
    %v95 = vsel %vm93, %v89, 0.0
    %v96 = vadd.f32 %v94, %v95
    %v97 = vsel %vm93, %v85, 0.0
    %v98 = vadd.f32 %v96, %v97
    %v99 = vsel %vm93, %v90, 0.0
    %v100 = vadd.f32 %v98, %v99
    %101 = vadd.xlane.f32.xlu0 %v100
    %v102 = vpop.xlane.xlu0 %101
    %v103 = vrot.slane %v102, 4
    %v104 = vadd.f32 %v102, %v103
    %v105 = vrot.slane %v104, 2
    %v106 = vadd.f32 %v104, %v105
    %v107 = vrot.slane %v106, 1
    %v108 = vadd.f32 %v106, %v107
    %s109 = vtos %v108
    %s110 = sadd.f32 %s86, %s109
    %s111 = scalar_lea.smem [#allocation2], 0
    %112 = sst [smem:[%s111]] %s110
    %v113 = vld [vmem:[#allocation8] sm:$0xff]
    %v114 = vld [vmem:[#allocation8 + $0x8] sm:$0xff]
    %v115 = vsub.f32 %v113, 5.0
    %v116 = vsub.f32 %v114, 5.0
    %v117 = vmax.f32 %v115, 0.0
    %v118 = vmax.f32 %v116, 0.0
    %v119 = vsub.f32 0.5, %v113
    %v120 = vsub.f32 0.5, %v114
    %v121 = vmax.f32 %v119, 0.0
    %v122 = vmax.f32 %v120, 0.0
    %v123 = vadd.f32 %v117, %v121
    %v124 = vadd.f32 %v118, %v122
    %s125 = sld [smem:[#allocation2 + $0x1]]
    %v128 = vcombine.high %v123, %v123
    %v129 = vcombine.high %v124, %v124
    %v132 = vsel %vm93, %v123, 0.0
    %v133 = vsel %vm93, %v128, 0.0
    %v134 = vadd.f32 %v132, %v133
    %v135 = vsel %vm93, %v124, 0.0
    %v136 = vadd.f32 %v134, %v135
    %v137 = vsel %vm93, %v129, 0.0
    %v138 = vadd.f32 %v136, %v137
    %139 = vadd.xlane.f32.xlu0 %v138
    %v140 = vpop.xlane.xlu0 %139
    %v141 = vrot.slane %v140, 4
    %v142 = vadd.f32 %v140, %v141
    %v143 = vrot.slane %v142, 2
    %v144 = vadd.f32 %v142, %v143
    %v145 = vrot.slane %v144, 1
    %v146 = vadd.f32 %v144, %v145
    %s147 = vtos %v146
    %s148 = sadd.f32 %s125, %s147
    %s149 = scalar_lea.smem [#allocation2], 1
    %150 = sst [smem:[%s149]] %s148
    // Predicated region
    $region30: #{tpu_custom_call.1} parent=1 // pred_check
      %p151 = pneg %p50
    $region31: #{tpu_custom_call.1} parent=1 // pred_check_branch
      %153 = sbr.rel (%p151) target = $region33
    $region32: #{tpu_custom_call.1} parent=1 // pred_region
      %s154 = sld [smem:[#allocation2]]
      %s155 = scalar_lea.smem [#allocation9], 0
      %156 = sst [smem:[%s155]] %s154
      %s157 = sld [smem:[#allocation2 + $0x1]]
      %s158 = scalar_lea.smem [#allocation9], 1
      %159 = sst [smem:[%s158]] %s157
    $region33: #{tpu_custom_call.1} parent=1 // pred_fallthru
      _
    // Predicated region
    $region34: #{tpu_custom_call.1} parent=1 // pred_check
      _
    $region35: #{tpu_custom_call.1} parent=1 // pred_check_branch
      %161 = sbr.rel (0) target = $region37
    $region36: #{tpu_custom_call.1} parent=1 // pred_region
      %s163 = ssub.s32 16, 16
      %164 = vsyncadd [#allocation5], %s163
      %167 = dma.smem_to_hbm [#allocation9], 16, %s3, [#allocation5]
    $region37: #{tpu_custom_call.1} parent=1 // pred_fallthru
      _
    // Predicated region
    $region38: #{tpu_custom_call.1} parent=1 // pred_check
      _
    $region39: #{tpu_custom_call.1} parent=1 // pred_check_branch
      %169 = sbr.rel (0) target = $region41
    $region40: #{tpu_custom_call.1} parent=1 // pred_region
      %170 = dma.done [#allocation5], 16
    $region41: #{tpu_custom_call.1} parent=1 // pred_fallthru
      _
    %171 = sfence
    %172 = vsyncpa [#allocation4], 1
    %173 = vsyncpa [#allocation7], 1
    %174 = vsyncpa [#allocation5], 1

</llo_original>
